<compile_context>
chip_gen: v7x
topology: tpu7x:2x2x1
jax: 0.10.0
libtpu: 0.0.40
codegen_flags: <defaults>
</compile_context>

<pallas_src>
import jax
import jax.numpy as jnp
from jax.experimental import pallas as pl
from jax.experimental.pallas import tpu as pltpu

BN_EPS = 1e-5
LANE = 128


def _round_up(n, m):
    return ((n + m - 1) // m) * m


def encoder_kernel(x_ref, w1_ref, w2_ref, wh_ref, rows_ref, out_ref):
    d1 = w1_ref.shape[1]   # hidden*2
    d2 = w2_ref.shape[1]   # hidden
    dh = wh_ref.shape[1]   # lane-padded 2*latent

    # Packed per-feature row vectors (single DMA for all small params), f32.
    g1 = rows_ref[0:1, :d1]
    beta1 = rows_ref[1:2, :d1]
    g2 = rows_ref[2:3, :d2]
    beta2 = rows_ref[3:4, :d2]
    bhead = rows_ref[4:5, :dh]

    def bn_relu(h, g, beta):
        # Training-mode BN, biased variance, centered (cancellation-safe) form.
        m = jnp.mean(h, axis=0, keepdims=True)
        hc = h - m
        var = jnp.mean(hc * hc, axis=0, keepdims=True)
        scale = g * jax.lax.rsqrt(var + BN_EPS)       # rsqrt -> EUP slot (free)
        return jnp.maximum(hc * scale + beta, 0.0)    # 1 mul + 1 add + 1 max / elem

    mxu_dt = w1_ref.dtype                              # bf16 (or f32 variant)
    x = x_ref[...].astype(mxu_dt)
    # fc1/fc2 biases omitted: exactly cancelled by the BN mean subtraction.
    h = bn_relu(jnp.dot(x, w1_ref[...], preferred_element_type=jnp.float32),
                g1, beta1)
    h = bn_relu(jnp.dot(h.astype(mxu_dt), w2_ref[...],
                        preferred_element_type=jnp.float32),
                g2, beta2)
    # Fused mu|logvar head -> single MXU push, single unmasked 128-lane store.
    out_ref[...] = (jnp.dot(h.astype(mxu_dt), wh_ref[...],
                            preferred_element_type=jnp.float32)
                    + bhead).astype(out_ref.dtype)


def pack_params(p, mxu_dtype=jnp.bfloat16):
    """One-time packing of encoder parameters into the kernel layout (not per-call).
    Matmul weights are stored in `mxu_dtype` (bf16 production path); all BN/bias
    row parameters stay f32."""
    d1 = p["w1"].shape[1]          # hidden*2
    d2 = p["w2"].shape[1]          # hidden
    latent = p["wmu"].shape[1]
    dh = _round_up(2 * latent, LANE)
    dmax = max(d1, d2, dh)

    # Fused + zero-lane-padded head weight / bias.
    wh = jnp.concatenate([p["wmu"], p["wlv"]], axis=1)
    wh = jnp.pad(wh, ((0, 0), (0, dh - 2 * latent)))
    bh = jnp.concatenate([p["bmu"], p["blv"]], axis=1)
    bh = jnp.pad(bh, ((0, 0), (0, dh - 2 * latent)))

    rows = jnp.zeros((8, dmax), jnp.float32)
    rows = rows.at[0, :d1].set(p["g1"][0])
    rows = rows.at[1, :d1].set(p["beta1"][0])
    rows = rows.at[2, :d2].set(p["g2"][0])
    rows = rows.at[3, :d2].set(p["beta2"][0])
    rows = rows.at[4, :dh].set(bh[0])

    return dict(w1=p["w1"].astype(mxu_dtype),
                w2=p["w2"].astype(mxu_dtype),
                wh=wh.astype(mxu_dtype),
                rows=rows, latent=latent, dh=dh)


def encoder_forward(x, packed):
    """x: [B, D_in] float32. packed: output of pack_params (weights reused across
    calls; only x changes per invocation). Returns (mu, logvar), each [B, latent]."""
    B = x.shape[0]
    latent = packed["latent"]
    dh = packed["dh"]
    w1, w2, wh, rows = packed["w1"], packed["w2"], packed["wh"], packed["rows"]
    d_in, d1 = w1.shape
    d2 = w2.shape[1]

    # Scheduling hint for XLA around the custom call.
    flops = 2 * B * (d_in * d1 + d1 * d2 + d2 * dh)
    wbytes = (w1.size + w2.size + wh.size) * jnp.dtype(w1.dtype).itemsize
    io_bytes = wbytes + rows.size * 4 + B * (d_in + dh) * 4
    cost = pl.CostEstimate(flops=flops, transcendentals=d1 + d2,
                           bytes_accessed=io_bytes)

    # Whole batch is resident (no batch grid: training-mode BN stats span the full
    # batch).  Raise the scoped-VMEM limit only if a very large batch needs it.
    vmem_need = wbytes + rows.size * 4 + B * (d_in + 3 * d1 + 3 * d2 + 2 * dh) * 4
    call_kwargs = {}
    if vmem_need > (24 << 20):
        call_kwargs["compiler_params"] = pltpu.CompilerParams(
            vmem_limit_bytes=min(int(vmem_need * 3 // 2), 112 << 20))

    vmem = pl.BlockSpec(memory_space=pltpu.MemorySpace.VMEM)
    out = pl.pallas_call(
        encoder_kernel,
        out_shape=jax.ShapeDtypeStruct((B, dh), jnp.float32),
        in_specs=[vmem] * 5,
        out_specs=vmem,
        cost_estimate=cost,
        **call_kwargs,
    )(x, w1, w2, wh, rows)
    return out[:, :latent], out[:, latent:2 * latent]


def init_params(key, input_dim, hidden_dim, latent_dim):
    """Deterministic synthetic parameters (PyTorch-Linear-like uniform init).
    Linear weights stored pre-transposed as [in, out]."""
    keys = jax.random.split(key, 8)

    def linear(kw, kb, fan_in, fan_out):
        bound = 1.0 / jnp.sqrt(fan_in)
        w = jax.random.uniform(kw, (fan_in, fan_out), jnp.float32, -bound, bound)
        b = jax.random.uniform(kb, (1, fan_out), jnp.float32, -bound, bound)
        return w, b

    w1, b1 = linear(keys[0], keys[1], input_dim, hidden_dim * 2)
    w2, b2 = linear(keys[2], keys[3], hidden_dim * 2, hidden_dim)
    wmu, bmu = linear(keys[4], keys[5], hidden_dim, latent_dim)
    wlv, blv = linear(keys[6], keys[7], hidden_dim, latent_dim)

    return dict(
        w1=w1, b1=b1,
        g1=jnp.ones((1, hidden_dim * 2), jnp.float32),
        beta1=jnp.zeros((1, hidden_dim * 2), jnp.float32),
        w2=w2, b2=b2,
        g2=jnp.ones((1, hidden_dim), jnp.float32),
        beta2=jnp.zeros((1, hidden_dim), jnp.float32),
        wmu=wmu, bmu=bmu,
        wlv=wlv, blv=blv,
    )


def encoder_reference(x, p, *, mxu_dtype=jnp.float32):
    """Pure-JAX reference of the PyTorch forward (training-mode BN, biases included).
    mxu_dtype=float32  -> full-precision module semantics (HIGHEST matmuls).
    mxu_dtype=bfloat16 -> same MXU numerics as the production kernel path."""
    def dot(a, w):
        if mxu_dtype == jnp.bfloat16:
            return jnp.dot(a.astype(jnp.bfloat16), w.astype(jnp.bfloat16),
                           preferred_element_type=jnp.float32)
        return jnp.dot(a, w, precision=jax.lax.Precision.HIGHEST)

    def bn(h, g, b):
        m = jnp.mean(h, axis=0, keepdims=True)
        v = jnp.mean((h - m) ** 2, axis=0, keepdims=True)
        return (h - m) / jnp.sqrt(v + BN_EPS) * g + b

    h = jax.nn.relu(bn(dot(x, p["w1"]) + p["b1"], p["g1"], p["beta1"]))
    h = jax.nn.relu(bn(dot(h, p["w2"]) + p["b2"], p["g2"], p["beta2"]))
    return dot(h, p["wmu"]) + p["bmu"], dot(h, p["wlv"]) + p["blv"]


if __name__ == "__main__":
    # Small shapes consistent with the module: hidden_dim / latent_dim from the
    # spec, MFCC-sized feature vector stand-in, small batch.
    batch = 16
    input_dim = 32     # features.shape[1] stand-in
    hidden_dim = 128
    latent_dim = 16

    key = jax.random.PRNGKey(0)
    k_params, k_x = jax.random.split(key)
    params = init_params(k_params, input_dim, hidden_dim, latent_dim)
    x = jax.random.normal(k_x, (batch, input_dim), jnp.float32)

    packed = pack_params(params, mxu_dtype=jnp.bfloat16)   # one-time packing
    mu, logvar = encoder_forward(x, packed)
    jax.block_until_ready((mu, logvar))
    assert mu.shape == (batch, latent_dim) and logvar.shape == (batch, latent_dim)

    # Tight check against a reference with identical MXU numerics
    # (bf16 operands, f32 accumulation) -> validates all Pallas plumbing.
    mu_q, lv_q = encoder_reference(x, params, mxu_dtype=jnp.bfloat16)
    assert jnp.allclose(mu, mu_q, atol=2e-3, rtol=2e-3)
    assert jnp.allclose(logvar, lv_q, atol=2e-3, rtol=2e-3)

    # Looser check against the full-f32 module semantics: bf16 MXU operands trade
    # ~1% accuracy for ~2x weight-DMA / MXU throughput (per perf review).
    mu_f, lv_f = encoder_reference(x, params, mxu_dtype=jnp.float32)
    assert jnp.allclose(mu, mu_f, atol=1e-1, rtol=1e-1)
    assert jnp.allclose(logvar, lv_f, atol=1e-1, rtol=1e-1)

    print("KERNEL_OK")
</pallas_src>

<mosaic_0001>
module attributes {stable_mosaic.version = 11 : i64} {
  func.func @encoder_kernel(%arg0: memref<16x32xf32, #tpu.memory_space<vmem>>, %arg1: memref<32x256xbf16, #tpu.memory_space<vmem>>, %arg2: memref<256x128xbf16, #tpu.memory_space<vmem>>, %arg3: memref<128x128xbf16, #tpu.memory_space<vmem>>, %arg4: memref<8x256xf32, #tpu.memory_space<vmem>>, %arg5: memref<16x128xf32, #tpu.memory_space<vmem>>) attributes {dimension_semantics = [], scalar_prefetch = 0 : i64, scratch_operands = 0 : i64, tpu.core_type = #tpu.core_type<tc>} {
    %c0 = arith.constant 0 : index
    %c0_0 = arith.constant 0 : index
    %0 = vector.load %arg4[%c0, %c0_0] : memref<8x256xf32, #tpu.memory_space<vmem>>, vector<1x256xf32>
    %c1 = arith.constant 1 : index
    %c0_1 = arith.constant 0 : index
    %1 = vector.load %arg4[%c1, %c0_1] : memref<8x256xf32, #tpu.memory_space<vmem>>, vector<1x256xf32>
    %c2 = arith.constant 2 : index
    %c0_2 = arith.constant 0 : index
    %2 = vector.load %arg4[%c2, %c0_2] : memref<8x256xf32, #tpu.memory_space<vmem>>, vector<1x128xf32>
    %c3 = arith.constant 3 : index
    %c0_3 = arith.constant 0 : index
    %3 = vector.load %arg4[%c3, %c0_3] : memref<8x256xf32, #tpu.memory_space<vmem>>, vector<1x128xf32>
    %c4 = arith.constant 4 : index
    %c0_4 = arith.constant 0 : index
    %4 = vector.load %arg4[%c4, %c0_4] : memref<8x256xf32, #tpu.memory_space<vmem>>, vector<1x128xf32>
    %c0_5 = arith.constant 0 : index
    %c0_6 = arith.constant 0 : index
    %5 = vector.load %arg0[%c0_5, %c0_6] : memref<16x32xf32, #tpu.memory_space<vmem>>, vector<16x32xf32>
    %6 = arith.truncf %5 : vector<16x32xf32> to vector<16x32xbf16>
    %c0_7 = arith.constant 0 : index
    %c0_8 = arith.constant 0 : index
    %7 = vector.load %arg1[%c0_7, %c0_8] : memref<32x256xbf16, #tpu.memory_space<vmem>>, vector<32x256xbf16>
    %cst = arith.constant dense<0.000000e+00> : vector<16x256xf32>
    %8 = tpu.matmul %6, %7, %cst {dimension_numbers = #tpu.dot_dimension_numbers<[1], [0], [0], [1], [0, 0, 1, 1], [], []>} : vector<16x32xbf16>, vector<32x256xbf16>, vector<16x256xf32> -> vector<16x256xf32>
    %cst_9 = arith.constant dense<0.000000e+00> : vector<256xf32>
    %9 = vector.multi_reduction <add>, %8, %cst_9 [0] : vector<16x256xf32> to vector<256xf32>
    %10 = vector.shape_cast %9 : vector<256xf32> to vector<1x256xf32>
    %cst_10 = arith.constant 1.600000e+01 : f32
    %11 = vector.broadcast %cst_10 : f32 to vector<1x256xf32>
    %12 = arith.divf %10, %11 : vector<1x256xf32>
    %13 = vector.broadcast %12 : vector<1x256xf32> to vector<16x256xf32>
    %14 = arith.subf %8, %13 : vector<16x256xf32>
    %15 = arith.mulf %14, %14 : vector<16x256xf32>
    %cst_11 = arith.constant dense<0.000000e+00> : vector<256xf32>
    %16 = vector.multi_reduction <add>, %15, %cst_11 [0] : vector<16x256xf32> to vector<256xf32>
    %17 = vector.shape_cast %16 : vector<256xf32> to vector<1x256xf32>
    %cst_12 = arith.constant 1.600000e+01 : f32
    %18 = vector.broadcast %cst_12 : f32 to vector<1x256xf32>
    %19 = arith.divf %17, %18 : vector<1x256xf32>
    %cst_13 = arith.constant 9.99999974E-6 : f32
    %20 = vector.broadcast %cst_13 : f32 to vector<1x256xf32>
    %21 = arith.addf %19, %20 : vector<1x256xf32>
    %22 = math.rsqrt %21 : vector<1x256xf32>
    %23 = arith.mulf %0, %22 : vector<1x256xf32>
    %24 = vector.broadcast %23 : vector<1x256xf32> to vector<16x256xf32>
    %25 = arith.mulf %14, %24 : vector<16x256xf32>
    %26 = vector.broadcast %1 : vector<1x256xf32> to vector<16x256xf32>
    %27 = arith.addf %25, %26 : vector<16x256xf32>
    %cst_14 = arith.constant 0.000000e+00 : f32
    %28 = vector.broadcast %cst_14 : f32 to vector<16x256xf32>
    %29 = arith.maximumf %27, %28 : vector<16x256xf32>
    %30 = arith.truncf %29 : vector<16x256xf32> to vector<16x256xbf16>
    %c0_15 = arith.constant 0 : index
    %c0_16 = arith.constant 0 : index
    %31 = vector.load %arg2[%c0_15, %c0_16] : memref<256x128xbf16, #tpu.memory_space<vmem>>, vector<256x128xbf16>
    %cst_17 = arith.constant dense<0.000000e+00> : vector<16x128xf32>
    %32 = tpu.matmul %30, %31, %cst_17 {dimension_numbers = #tpu.dot_dimension_numbers<[1], [0], [0], [1], [0, 0, 1, 1], [], []>} : vector<16x256xbf16>, vector<256x128xbf16>, vector<16x128xf32> -> vector<16x128xf32>
    %cst_18 = arith.constant dense<0.000000e+00> : vector<128xf32>
    %33 = vector.multi_reduction <add>, %32, %cst_18 [0] : vector<16x128xf32> to vector<128xf32>
    %34 = vector.shape_cast %33 : vector<128xf32> to vector<1x128xf32>
    %cst_19 = arith.constant 1.600000e+01 : f32
    %35 = vector.broadcast %cst_19 : f32 to vector<1x128xf32>
    %36 = arith.divf %34, %35 : vector<1x128xf32>
    %37 = vector.broadcast %36 : vector<1x128xf32> to vector<16x128xf32>
    %38 = arith.subf %32, %37 : vector<16x128xf32>
    %39 = arith.mulf %38, %38 : vector<16x128xf32>
    %cst_20 = arith.constant dense<0.000000e+00> : vector<128xf32>
    %40 = vector.multi_reduction <add>, %39, %cst_20 [0] : vector<16x128xf32> to vector<128xf32>
    %41 = vector.shape_cast %40 : vector<128xf32> to vector<1x128xf32>
    %cst_21 = arith.constant 1.600000e+01 : f32
    %42 = vector.broadcast %cst_21 : f32 to vector<1x128xf32>
    %43 = arith.divf %41, %42 : vector<1x128xf32>
    %cst_22 = arith.constant 9.99999974E-6 : f32
    %44 = vector.broadcast %cst_22 : f32 to vector<1x128xf32>
    %45 = arith.addf %43, %44 : vector<1x128xf32>
    %46 = math.rsqrt %45 : vector<1x128xf32>
    %47 = arith.mulf %2, %46 : vector<1x128xf32>
    %48 = vector.broadcast %47 : vector<1x128xf32> to vector<16x128xf32>
    %49 = arith.mulf %38, %48 : vector<16x128xf32>
    %50 = vector.broadcast %3 : vector<1x128xf32> to vector<16x128xf32>
    %51 = arith.addf %49, %50 : vector<16x128xf32>
    %cst_23 = arith.constant 0.000000e+00 : f32
    %52 = vector.broadcast %cst_23 : f32 to vector<16x128xf32>
    %53 = arith.maximumf %51, %52 : vector<16x128xf32>
    %54 = arith.truncf %53 : vector<16x128xf32> to vector<16x128xbf16>
    %c0_24 = arith.constant 0 : index
    %c0_25 = arith.constant 0 : index
    %55 = vector.load %arg3[%c0_24, %c0_25] : memref<128x128xbf16, #tpu.memory_space<vmem>>, vector<128x128xbf16>
    %cst_26 = arith.constant dense<0.000000e+00> : vector<16x128xf32>
    %56 = tpu.matmul %54, %55, %cst_26 {dimension_numbers = #tpu.dot_dimension_numbers<[1], [0], [0], [1], [0, 0, 1, 1], [], []>} : vector<16x128xbf16>, vector<128x128xbf16>, vector<16x128xf32> -> vector<16x128xf32>
    %57 = vector.broadcast %4 : vector<1x128xf32> to vector<16x128xf32>
    %58 = arith.addf %56, %57 : vector<16x128xf32>
    %c0_27 = arith.constant 0 : index
    %c0_28 = arith.constant 0 : index
    %59 = vector.load %arg5[%c0_27, %c0_28] : memref<16x128xf32, #tpu.memory_space<vmem>>, vector<16x128xf32>
    tpu.vector_store %arg5[%c0_27, %c0_28], %58 {strides = array<i32>} : memref<16x128xf32, #tpu.memory_space<vmem>>, vector<16x128xf32>,
    return
  }
}

</mosaic_0001>

<llo_original>
// kernel: tpu_custom_call.1
$region0: #{tpu_custom_call.1}
  #allocation0 [shape = 'u32[]', space=smem, size = 0x4, offset = 0x4, fixed_abs, tag = 'smem constant byte address 0x4 - core index']
  #allocation1 [shape = 'u32[144,128]{1,0:T(1,128)}', space=vmem, size = 0x12000, scoped, tag = 'internal scratch']
  %s0 = inlined_call_operand.hbm [shape: f32[16,32], index: 0, kind: input, shape index: {}]
  %s1 = inlined_call_operand.hbm [shape: bf16[32,256], index: 1, kind: input, shape index: {}]
  %s2 = inlined_call_operand.hbm [shape: bf16[256,128], index: 2, kind: input, shape index: {}]
  %s3 = inlined_call_operand.hbm [shape: bf16[128,128], index: 3, kind: input, shape index: {}]
  %s4 = inlined_call_operand.hbm [shape: f32[8,256], index: 4, kind: input, shape index: {}]
  %s5 = inlined_call_operand.hbm [shape: f32[16,128], index: 5, kind: output, shape index: {}]
  %s6 = sld [smem:[#allocation0]]
  $region50: #{tpu_custom_call.1} parent=0
    _
  %s8 = ssub.s32 1, %s6
  %s9 = scalar_select 0, %s8, %s6
  $region1: #{tpu_custom_call.1} parent=0
    #allocation2 [shape = 'u8[8192]{0}', space=vmem, size = 0x2000, scoped, tag = 'input window, operand 0, single buffered']
    #allocation3 [shape = 's32[1]{0}', space=sflag, size = 0x4, scoped, tag = 'scoped memory for tpu_custom_call.1']
    #allocation4 [shape = 's32[1]{0}', space=sflag, size = 0x4, scoped, tag = 'scoped memory for tpu_custom_call.1']
    #allocation5 [shape = 'u8[16384]{0}', space=vmem, size = 0x4000, scoped, tag = 'input window, operand 1, single buffered']
    #allocation6 [shape = 's32[1]{0}', space=sflag, size = 0x4, scoped, tag = 'scoped memory for tpu_custom_call.1']
    #allocation7 [shape = 'u8[65536]{0}', space=vmem, size = 0x10000, scoped, tag = 'input window, operand 2, single buffered']
    #allocation8 [shape = 'u8[32768]{0}', space=vmem, size = 0x8000, scoped, tag = 'input window, operand 3, single buffered']
    #allocation9 [shape = 's32[1]{0}', space=sflag, size = 0x4, scoped, tag = 'scoped memory for tpu_custom_call.1']
    #allocation10 [shape = 'u8[8192]{0}', space=vmem, size = 0x2000, scoped, tag = 'input window, operand 4, single buffered']
    #allocation11 [shape = 'u8[8192]{0}', space=vmem, size = 0x2000, scoped, tag = 'output window, operand 0, single buffered']
    %10 = vsyncpa [#allocation3], 0
    %11 = vsyncpa [#allocation6], 0
    %12 = vsyncpa [#allocation9], 0
    %13 = vsyncpa [#allocation4], 0
    // Predicated region
    $region2: #{tpu_custom_call.1} parent=1 // pred_check
      _
    $region3: #{tpu_custom_call.1} parent=1 // pred_check_branch
      %15 = sbr.rel (0) target = $region5
    $region4: #{tpu_custom_call.1} parent=1 // pred_region
      %s17 = ssub.s32 256, 256
      %18 = vsyncadd [#allocation3], %s17
      %s19 = sshll.u32 [#allocation2], 4
      %s20 = int_to_ptr.vmem [resolvable:$true] %s19
      %25 = dma.hbm_to_vmem [thread:$0]  %s0, 256, %s20, [#allocation3], 128, 128, 8
    $region5: #{tpu_custom_call.1} parent=1 // pred_fallthru
      _
    // Predicated region
    $region6: #{tpu_custom_call.1} parent=1 // pred_check
      _
    $region7: #{tpu_custom_call.1} parent=1 // pred_check_branch
      %27 = sbr.rel (0) target = $region9
    $region8: #{tpu_custom_call.1} parent=1 // pred_region
      %s29 = ssub.s32 512, 512
      %30 = vsyncadd [#allocation6], %s29
      %s31 = sshll.u32 [#allocation5], 4
      %s32 = int_to_ptr.vmem [resolvable:$true] %s31
      %37 = dma.hbm_to_vmem [thread:$0]  %s1, 512, %s32, [#allocation6], 128, 128, 8
    $region9: #{tpu_custom_call.1} parent=1 // pred_fallthru
      _
    // Predicated region
    $region10: #{tpu_custom_call.1} parent=1 // pred_check
      _
    $region11: #{tpu_custom_call.1} parent=1 // pred_check_branch
      %39 = sbr.rel (0) target = $region13
    $region12: #{tpu_custom_call.1} parent=1 // pred_region
      %s41 = ssub.s32 2048, 2048
      %42 = vsyncadd [#allocation6], %s41
      %s43 = sshll.u32 [#allocation7], 4
      %s44 = int_to_ptr.vmem [resolvable:$true] %s43
      %49 = dma.hbm_to_vmem [thread:$0]  %s2, 2048, %s44, [#allocation6], 64, 64, 4
    $region13: #{tpu_custom_call.1} parent=1 // pred_fallthru
      _
    // Predicated region
    $region14: #{tpu_custom_call.1} parent=1 // pred_check
      _
    $region15: #{tpu_custom_call.1} parent=1 // pred_check_branch
      %51 = sbr.rel (0) target = $region17
    $region16: #{tpu_custom_call.1} parent=1 // pred_region
      %s53 = ssub.s32 1024, 1024
      %54 = vsyncadd [#allocation9], %s53
      %s55 = sshll.u32 [#allocation8], 4
      %s56 = int_to_ptr.vmem [resolvable:$true] %s55
      %61 = dma.hbm_to_vmem [thread:$0]  %s3, 1024, %s56, [#allocation9], 64, 64, 4
    $region17: #{tpu_custom_call.1} parent=1 // pred_fallthru
      _
    // Predicated region
    $region18: #{tpu_custom_call.1} parent=1 // pred_check
      _
    $region19: #{tpu_custom_call.1} parent=1 // pred_check_branch
      %63 = sbr.rel (0) target = $region21
    $region20: #{tpu_custom_call.1} parent=1 // pred_region
      %s65 = ssub.s32 256, 256
      %66 = vsyncadd [#allocation9], %s65
      %s68 = sshll.u32 [#allocation10], 4
      %s69 = int_to_ptr.vmem [resolvable:$true] %s68
      %71 = dma.hbm_to_vmem [thread:$0]  %s4, 256, %s69, [#allocation9]
    $region21: #{tpu_custom_call.1} parent=1 // pred_fallthru
      _
    // Predicated region
    $region22: #{tpu_custom_call.1} parent=1 // pred_check
      _
    $region23: #{tpu_custom_call.1} parent=1 // pred_check_branch
      %73 = sbr.rel (0) target = $region25
    $region24: #{tpu_custom_call.1} parent=1 // pred_region
      %74 = dma.done [#allocation3], 256
    $region25: #{tpu_custom_call.1} parent=1 // pred_fallthru
      _
    // Predicated region
    $region26: #{tpu_custom_call.1} parent=1 // pred_check
      _
    $region27: #{tpu_custom_call.1} parent=1 // pred_check_branch
      %76 = sbr.rel (0) target = $region29
    $region28: #{tpu_custom_call.1} parent=1 // pred_region
      %77 = dma.done [#allocation6], 512
    $region29: #{tpu_custom_call.1} parent=1 // pred_fallthru
      _
    // Predicated region
    $region30: #{tpu_custom_call.1} parent=1 // pred_check
      _
    $region31: #{tpu_custom_call.1} parent=1 // pred_check_branch
      %79 = sbr.rel (0) target = $region33
    $region32: #{tpu_custom_call.1} parent=1 // pred_region
      %80 = dma.done [#allocation6], 2048
    $region33: #{tpu_custom_call.1} parent=1 // pred_fallthru
      _
    // Predicated region
    $region34: #{tpu_custom_call.1} parent=1 // pred_check
      _
    $region35: #{tpu_custom_call.1} parent=1 // pred_check_branch
      %82 = sbr.rel (0) target = $region37
    $region36: #{tpu_custom_call.1} parent=1 // pred_region
      %83 = dma.done [#allocation9], 1024
    $region37: #{tpu_custom_call.1} parent=1 // pred_fallthru
      _
    // Predicated region
    $region38: #{tpu_custom_call.1} parent=1 // pred_check
      _
    $region39: #{tpu_custom_call.1} parent=1 // pred_check_branch
      %85 = sbr.rel (0) target = $region41
    $region40: #{tpu_custom_call.1} parent=1 // pred_region
      %86 = dma.done [#allocation9], 256
    $region41: #{tpu_custom_call.1} parent=1 // pred_fallthru
      _
    %v88 = vld [vmem:[#allocation10] ss:$8 sm:$0x3]
    %s89 = scalar_lea.vmem [#allocation10], 1
    %v90 = vld [vmem:[%s89] ss:$8 sm:$0x3]
    %v91 = vld [vmem:[#allocation10 + $0x2] ss:$0 sm:$0xff]
    %v92 = vld [vmem:[#allocation10 + $0x3] ss:$0 sm:$0xff]
    %v93 = vld [vmem:[#allocation10 + $0x4] ss:$0 sm:$0xff]
    %v94 = vld [vmem:[#allocation2] sm:$0xff]
    %v95 = vld [vmem:[#allocation2 + $0x8] sm:$0xff]
    %v96 = vpack.c.bf16 %v95, %v94
    %v97 = vld [vmem:[#allocation5] sm:$0xff]
    %v98 = vld [vmem:[#allocation5 + $0x8] sm:$0xff]
    %v99 = vld [vmem:[#allocation5 + $0x10] sm:$0xff]
    %v100 = vld [vmem:[#allocation5 + $0x18] sm:$0xff]
    %v105 = vunpack.c.l.b16 %v97
    %v106 = vunpack.c.h.b16 %v97
    %v107 = vunpack.c.l.b16 %v98
    %v108 = vunpack.c.h.b16 %v98
    %v109 = vunpack.c.l.b16 %v99
    %v110 = vunpack.c.h.b16 %v99
    %v111 = vunpack.c.l.b16 %v100
    %v112 = vunpack.c.h.b16 %v100
    %v113 = vpack.c.b16 %v107, %v105
    %v114 = vpack.c.b16 %v108, %v106
    %v115 = vpack.c.b16 %v111, %v109
    %v116 = vpack.c.b16 %v112, %v110
    %vm121 = vcmask 261120
    %v123 = vsel %vm121, %v96, 0
    %125 = vmatprep.subr.bf16.mxu0 %v114
    %126 = vmatpush1.bf16.msra.mxu0 %v113
    %127 = vmatprep.subr.bf16.mxu0 %v116
    %128 = vmatpush1.bf16.msra.mxu0 %v115
    %129 = vmatprep.subr.bf16.mxu0 0
    %130 = vmatpush1.bf16.msra.mxu0 0
    %131 = vmatprep.subr.bf16.mxu0 0
    %132 = vmatpush1.bf16.msra.mxu0 0
    %133 = vmatprep.subr.bf16.mxu0 0
    %134 = vmatpush1.bf16.msra.mxu0 0
    %135 = vmatprep.subr.bf16.mxu0 0
    %136 = vmatpush1.bf16.msra.mxu0 0
    %137 = vmatprep.subr.bf16.mxu0 0
    %138 = vmatpush1.bf16.msra.mxu0 0
    %139 = vmatprep.subr.bf16.mxu0 0
    %140 = vmatpush1.bf16.msra.mxu0 0
    %141 = vmatprep.subr.bf16.mxu0 0
    %142 = vmatpush1.bf16.msra.mxu0 0
    %143 = vmatprep.subr.bf16.mxu0 0
    %144 = vmatpush1.bf16.msra.mxu0 0
    %145 = vmatprep.subr.bf16.mxu0 0
    %146 = vmatpush1.bf16.msra.mxu0 0
    %147 = vmatprep.subr.bf16.mxu0 0
    %148 = vmatpush1.bf16.msra.mxu0 0
    %149 = vmatprep.subr.bf16.mxu0 0
    %150 = vmatpush1.bf16.msra.mxu0 0
    %151 = vmatprep.subr.bf16.mxu0 0
    %152 = vmatpush1.bf16.msra.mxu0 0
    %153 = vmatprep.subr.bf16.mxu0 0
    %154 = vmatpush1.bf16.msra.mxu0 0
    %155 = vmatprep.subr.bf16.mxu0 0
    %156 = vmatpush1.bf16.msra.mxu0 0
    %157 = vmatprep.mubr.bf16.mxu0 0
    %158 = vmatmul.mubr.bf16.gmra.mrb[0].mxu0 %v123
    %v159 = vpop.f32.mrb[0].mxu0
    %v160 = vadd.f32 0.0, %v159
    %v161 = vpop.f32.mrb[0].mxu0
    %v162 = vadd.f32 0.0, %v161
    %v163 = vpop.f32.mrb[0].mxu0
    %v164 = vadd.f32 0.0, %v163
    %v165 = vpop.f32.mrb[0].mxu0
    %v166 = vadd.f32 0.0, %v165
    %167 = vdwg.mxu0
    %v168 = vadd.f32 %v160, %v164
    %v169 = vrot.slane %v168, 4
    %v170 = vadd.f32 %v168, %v169
    %v171 = vrot.slane %v170, 2
    %v172 = vadd.f32 %v170, %v171
    %v173 = vrot.slane %v172, 1
    %v174 = vadd.f32 %v172, %v173
    %v175 = vadd.f32 %v162, %v166
    %v176 = vrot.slane %v175, 4
    %v177 = vadd.f32 %v175, %v176
    %v178 = vrot.slane %v177, 2
    %v179 = vadd.f32 %v177, %v178
    %v180 = vrot.slane %v179, 1
    %v181 = vadd.f32 %v179, %v180
    %v182 = vrcp.pop 16.0
    %v183 = vmul.f32 %v174, %v182
    %v184 = vmul.f32 %v181, %v182
    %v185 = vsub.f32 %v160, %v183
    %v186 = vsub.f32 %v162, %v184
    %v187 = vsub.f32 %v164, %v183
    %v188 = vsub.f32 %v166, %v184
    %v189 = vmul.f32 %v185, %v185
    %v190 = vmul.f32 %v186, %v186
    %v191 = vmul.f32 %v187, %v187
    %v192 = vmul.f32 %v188, %v188
    %v193 = vadd.f32 %v189, %v191
    %v194 = vrot.slane %v193, 4
    %v195 = vadd.f32 %v193, %v194
    %v196 = vrot.slane %v195, 2
    %v197 = vadd.f32 %v195, %v196
    %v198 = vrot.slane %v197, 1
    %v199 = vadd.f32 %v197, %v198
    %v200 = vadd.f32 %v190, %v192
    %v201 = vrot.slane %v200, 4
    %v202 = vadd.f32 %v200, %v201
    %v203 = vrot.slane %v202, 2
    %v204 = vadd.f32 %v202, %v203
    %v205 = vrot.slane %v204, 1
    %v206 = vadd.f32 %v204, %v205
    %v207 = vmul.f32 %v199, %v182
    %v208 = vmul.f32 %v206, %v182
    %v209 = vadd.f32 %v207, 1e-05
    %v210 = vadd.f32 %v208, 1e-05
    %v211 = vrsqrt.pop %v209
    %v212 = vrsqrt.pop %v210
    %v215 = vcombine.low %v211, %v212
    %v217 = vunpack.c.l.s4 1966171168
    %v218 = vunpack.c.0.s8 %v217
    %v219 = vlaneseq
    %v220 = vshrl.u32 %v219, 7
    %v221 = vsub.s32 %v218, %v220
    %v222 = vrot.slane %v215, %v221
    %v224 = vunpack.c.l.s4 1966171168
    %v225 = vunpack.c.0.s8 %v224
    %v226 = vlaneseq
    %v227 = vshrl.u32 %v226, 7
    %v228 = vsub.s32 %v225, %v227
    %v229 = vrot.slane %v222, %v228
    %v231 = vmul.f32 %v88, %v229
    %v233 = vlaneseq
    %v234 = vshrl.u32 %v233, 7
    %v235 = vsub.s32 0, %v234
    %v236 = vrot.slane %v231, %v235
    %v237 = vlaneseq
    %v238 = vshrl.u32 %v237, 7
    %v239 = vsub.s32 1, %v238
    %v240 = vrot.slane %v231, %v239
    %v243 = vmul.f32 %v185, %v236
    %v244 = vmul.f32 %v186, %v240
    %v245 = vmul.f32 %v187, %v236
    %v246 = vmul.f32 %v188, %v240
    %v248 = vlaneseq
    %v249 = vshrl.u32 %v248, 7
    %v250 = vsub.s32 0, %v249
    %v251 = vrot.slane %v90, %v250
    %v252 = vlaneseq
    %v253 = vshrl.u32 %v252, 7
    %v254 = vsub.s32 1, %v253
    %v255 = vrot.slane %v90, %v254
    %v258 = vadd.f32 %v243, %v251
    %v259 = vadd.f32 %v244, %v255
    %v260 = vadd.f32 %v245, %v251
    %v261 = vadd.f32 %v246, %v255
    %v262 = vmax.f32 %v258, 0.0
    %v263 = vmax.f32 %v259, 0.0
    %v264 = vmax.f32 %v260, 0.0
    %v265 = vmax.f32 %v261, 0.0
    %v266 = vpack.c.bf16 %v264, %v262
    %v267 = vpack.c.bf16 %v265, %v263
    %v268 = vld [vmem:[#allocation7] sm:$0xf]
    %v269 = vld [vmem:[#allocation7 + $0x4] sm:$0xf]
    %v270 = vld [vmem:[#allocation7 + $0x8] sm:$0xf]
    %v271 = vld [vmem:[#allocation7 + $0xc] sm:$0xf]
    %v272 = vld [vmem:[#allocation7 + $0x10] sm:$0xf]
    %v273 = vld [vmem:[#allocation7 + $0x14] sm:$0xf]
    %v274 = vld [vmem:[#allocation7 + $0x18] sm:$0xf]
    %v275 = vld [vmem:[#allocation7 + $0x1c] sm:$0xf]
    %v276 = vld [vmem:[#allocation7 + $0x20] sm:$0xf]
    %v277 = vld [vmem:[#allocation7 + $0x24] sm:$0xf]
    %v278 = vld [vmem:[#allocation7 + $0x28] sm:$0xf]
    %v279 = vld [vmem:[#allocation7 + $0x2c] sm:$0xf]
    %v280 = vld [vmem:[#allocation7 + $0x30] sm:$0xf]
    %v281 = vld [vmem:[#allocation7 + $0x34] sm:$0xf]
    %v282 = vld [vmem:[#allocation7 + $0x38] sm:$0xf]
    %v283 = vld [vmem:[#allocation7 + $0x3c] sm:$0xf]
    %v284 = vld [vmem:[#allocation7 + $0x40] sm:$0xf]
    %v285 = vld [vmem:[#allocation7 + $0x44] sm:$0xf]
    %v286 = vld [vmem:[#allocation7 + $0x48] sm:$0xf]
    %v287 = vld [vmem:[#allocation7 + $0x4c] sm:$0xf]
    %v288 = vld [vmem:[#allocation7 + $0x50] sm:$0xf]
    %v289 = vld [vmem:[#allocation7 + $0x54] sm:$0xf]
    %v290 = vld [vmem:[#allocation7 + $0x58] sm:$0xf]
    %v291 = vld [vmem:[#allocation7 + $0x5c] sm:$0xf]
    %v292 = vld [vmem:[#allocation7 + $0x60] sm:$0xf]
    %v293 = vld [vmem:[#allocation7 + $0x64] sm:$0xf]
    %v294 = vld [vmem:[#allocation7 + $0x68] sm:$0xf]
    %v295 = vld [vmem:[#allocation7 + $0x6c] sm:$0xf]
    %v296 = vld [vmem:[#allocation7 + $0x70] sm:$0xf]
    %v297 = vld [vmem:[#allocation7 + $0x74] sm:$0xf]
    %v298 = vld [vmem:[#allocation7 + $0x78] sm:$0xf]
    %v299 = vld [vmem:[#allocation7 + $0x7c] sm:$0xf]
    %v332 = vunpack.c.l.b16 %v268
    %v333 = vunpack.c.l.b16 %v269
    %v334 = vunpack.c.l.b16 %v270
    %v335 = vunpack.c.l.b16 %v271
    %v336 = vunpack.c.l.b16 %v272
    %v337 = vunpack.c.l.b16 %v273
    %v338 = vunpack.c.l.b16 %v274
    %v339 = vunpack.c.l.b16 %v275
    %v340 = vunpack.c.l.b16 %v276
    %v341 = vunpack.c.l.b16 %v277
    %v342 = vunpack.c.l.b16 %v278
    %v343 = vunpack.c.l.b16 %v279
    %v344 = vunpack.c.l.b16 %v280
    %v345 = vunpack.c.l.b16 %v281
    %v346 = vunpack.c.l.b16 %v282
    %v347 = vunpack.c.l.b16 %v283
    %v348 = vunpack.c.l.b16 %v284
    %v349 = vunpack.c.l.b16 %v285
    %v350 = vunpack.c.l.b16 %v286
    %v351 = vunpack.c.l.b16 %v287
    %v352 = vunpack.c.l.b16 %v288
    %v353 = vunpack.c.l.b16 %v289
    %v354 = vunpack.c.l.b16 %v290
    %v355 = vunpack.c.l.b16 %v291
    %v356 = vunpack.c.l.b16 %v292
    %v357 = vunpack.c.l.b16 %v293
    %v358 = vunpack.c.l.b16 %v294
    %v359 = vunpack.c.l.b16 %v295
    %v360 = vunpack.c.l.b16 %v296
    %v361 = vunpack.c.l.b16 %v297
    %v362 = vunpack.c.l.b16 %v298
    %v363 = vunpack.c.l.b16 %v299
    %v364 = vpack.c.b16 %v333, %v332
    %v365 = vpack.c.b16 %v335, %v334
    %v366 = vpack.c.b16 %v337, %v336
    %v367 = vpack.c.b16 %v339, %v338
    %v368 = vpack.c.b16 %v341, %v340
    %v369 = vpack.c.b16 %v343, %v342
    %v370 = vpack.c.b16 %v345, %v344
    %v371 = vpack.c.b16 %v347, %v346
    %v372 = vpack.c.b16 %v349, %v348
    %v373 = vpack.c.b16 %v351, %v350
    %v374 = vpack.c.b16 %v353, %v352
    %v375 = vpack.c.b16 %v355, %v354
    %v376 = vpack.c.b16 %v357, %v356
    %v377 = vpack.c.b16 %v359, %v358
    %v378 = vpack.c.b16 %v361, %v360
    %v379 = vpack.c.b16 %v363, %v362
    %396 = vmatprep.subr.bf16.mxu0 0
    %397 = vmatpush1.bf16.msra.mxu0 %v364
    %398 = vmatprep.subr.bf16.mxu0 0
    %399 = vmatpush1.bf16.msra.mxu0 %v365
    %400 = vmatprep.subr.bf16.mxu0 0
    %401 = vmatpush1.bf16.msra.mxu0 %v366
    %402 = vmatprep.subr.bf16.mxu0 0
    %403 = vmatpush1.bf16.msra.mxu0 %v367
    %404 = vmatprep.subr.bf16.mxu0 0
    %405 = vmatpush1.bf16.msra.mxu0 %v368
    %406 = vmatprep.subr.bf16.mxu0 0
    %407 = vmatpush1.bf16.msra.mxu0 %v369
    %408 = vmatprep.subr.bf16.mxu0 0
    %409 = vmatpush1.bf16.msra.mxu0 %v370
    %410 = vmatprep.subr.bf16.mxu0 0
    %411 = vmatpush1.bf16.msra.mxu0 %v371
    %412 = vmatprep.subr.bf16.mxu0 0
    %413 = vmatpush1.bf16.msra.mxu0 %v372
    %414 = vmatprep.subr.bf16.mxu0 0
    %415 = vmatpush1.bf16.msra.mxu0 %v373
    %416 = vmatprep.subr.bf16.mxu0 0
    %417 = vmatpush1.bf16.msra.mxu0 %v374
    %418 = vmatprep.subr.bf16.mxu0 0
    %419 = vmatpush1.bf16.msra.mxu0 %v375
    %420 = vmatprep.subr.bf16.mxu0 0
    %421 = vmatpush1.bf16.msra.mxu0 %v376
    %422 = vmatprep.subr.bf16.mxu0 0
    %423 = vmatpush1.bf16.msra.mxu0 %v377
    %424 = vmatprep.subr.bf16.mxu0 0
    %425 = vmatpush1.bf16.msra.mxu0 %v378
    %426 = vmatprep.subr.bf16.mxu0 0
    %427 = vmatpush1.bf16.msra.mxu0 %v379
    %428 = vmatprep.mubr.bf16.mxu0 %v267
    %429 = vmatmul.mubr.bf16.gmra.mrb[0].mxu0 %v266
    %v430 = vpop.f32.mrb[0].mxu0
    %v431 = vadd.f32 0.0, %v430
    %v432 = vpop.f32.mrb[0].mxu0
    %v433 = vpop.f32.mrb[0].mxu0
    %v434 = vadd.f32 0.0, %v433
    %v435 = vpop.f32.mrb[0].mxu0
    %436 = vdwg.mxu0
    %v437 = vadd.f32 %v431, %v434
    %v438 = vrot.slane %v437, 4
    %v439 = vadd.f32 %v437, %v438
    %v440 = vrot.slane %v439, 2
    %v441 = vadd.f32 %v439, %v440
    %v442 = vrot.slane %v441, 1
    %v443 = vadd.f32 %v441, %v442
    %v444 = vmul.f32 %v443, %v182
    %v445 = vsub.f32 %v431, %v444
    %v446 = vsub.f32 %v434, %v444
    %v447 = vmul.f32 %v445, %v445
    %v448 = vmul.f32 %v446, %v446
    %v449 = vadd.f32 %v447, %v448
    %v450 = vrot.slane %v449, 4
    %v451 = vadd.f32 %v449, %v450
    %v452 = vrot.slane %v451, 2
    %v453 = vadd.f32 %v451, %v452
    %v454 = vrot.slane %v453, 1
    %v455 = vadd.f32 %v453, %v454
    %v456 = vmul.f32 %v455, %v182
    %v457 = vadd.f32 %v456, 1e-05
    %v458 = vrsqrt.pop %v457
    %v459 = vmul.f32 %v91, %v458
    %v460 = vmul.f32 %v445, %v459
    %v461 = vmul.f32 %v446, %v459
    %v462 = vadd.f32 %v460, %v92
    %v463 = vadd.f32 %v461, %v92
    %v464 = vmax.f32 %v462, 0.0
    %v465 = vmax.f32 %v463, 0.0
    %v466 = vpack.c.bf16 %v465, %v464
    %v467 = vld [vmem:[#allocation8] sm:$0xf]
    %v468 = vld [vmem:[#allocation8 + $0x4] sm:$0xf]
    %v469 = vld [vmem:[#allocation8 + $0x8] sm:$0xf]
    %v470 = vld [vmem:[#allocation8 + $0xc] sm:$0xf]
    %v471 = vld [vmem:[#allocation8 + $0x10] sm:$0xf]
    %v472 = vld [vmem:[#allocation8 + $0x14] sm:$0xf]
    %v473 = vld [vmem:[#allocation8 + $0x18] sm:$0xf]
    %v474 = vld [vmem:[#allocation8 + $0x1c] sm:$0xf]
    %v475 = vld [vmem:[#allocation8 + $0x20] sm:$0xf]
    %v476 = vld [vmem:[#allocation8 + $0x24] sm:$0xf]
    %v477 = vld [vmem:[#allocation8 + $0x28] sm:$0xf]
    %v478 = vld [vmem:[#allocation8 + $0x2c] sm:$0xf]
    %v479 = vld [vmem:[#allocation8 + $0x30] sm:$0xf]
    %v480 = vld [vmem:[#allocation8 + $0x34] sm:$0xf]
    %v481 = vld [vmem:[#allocation8 + $0x38] sm:$0xf]
    %v482 = vld [vmem:[#allocation8 + $0x3c] sm:$0xf]
    %v499 = vunpack.c.l.b16 %v467
    %v500 = vunpack.c.l.b16 %v468
    %v501 = vunpack.c.l.b16 %v469
    %v502 = vunpack.c.l.b16 %v470
    %v503 = vunpack.c.l.b16 %v471
    %v504 = vunpack.c.l.b16 %v472
    %v505 = vunpack.c.l.b16 %v473
    %v506 = vunpack.c.l.b16 %v474
    %v507 = vunpack.c.l.b16 %v475
    %v508 = vunpack.c.l.b16 %v476
    %v509 = vunpack.c.l.b16 %v477
    %v510 = vunpack.c.l.b16 %v478
    %v511 = vunpack.c.l.b16 %v479
    %v512 = vunpack.c.l.b16 %v480
    %v513 = vunpack.c.l.b16 %v481
    %v514 = vunpack.c.l.b16 %v482
    %v515 = vpack.c.b16 %v500, %v499
    %v516 = vpack.c.b16 %v502, %v501
    %v517 = vpack.c.b16 %v504, %v503
    %v518 = vpack.c.b16 %v506, %v505
    %v519 = vpack.c.b16 %v508, %v507
    %v520 = vpack.c.b16 %v510, %v509
    %v521 = vpack.c.b16 %v512, %v511
    %v522 = vpack.c.b16 %v514, %v513
    %531 = vmatprep.subr.bf16.mxu0 0
    %532 = vmatpush1.bf16.msra.mxu0 %v515
    %533 = vmatprep.subr.bf16.mxu0 0
    %534 = vmatpush1.bf16.msra.mxu0 %v516
    %535 = vmatprep.subr.bf16.mxu0 0
    %536 = vmatpush1.bf16.msra.mxu0 %v517
    %537 = vmatprep.subr.bf16.mxu0 0
    %538 = vmatpush1.bf16.msra.mxu0 %v518
    %539 = vmatprep.subr.bf16.mxu0 0
    %540 = vmatpush1.bf16.msra.mxu0 %v519
    %541 = vmatprep.subr.bf16.mxu0 0
    %542 = vmatpush1.bf16.msra.mxu0 %v520
    %543 = vmatprep.subr.bf16.mxu0 0
    %544 = vmatpush1.bf16.msra.mxu0 %v521
    %545 = vmatprep.subr.bf16.mxu0 0
    %546 = vmatpush1.bf16.msra.mxu0 %v522
    %547 = vmatprep.subr.bf16.mxu0 0
    %548 = vmatpush1.bf16.msra.mxu0 0
    %549 = vmatprep.subr.bf16.mxu0 0
    %550 = vmatpush1.bf16.msra.mxu0 0
    %551 = vmatprep.subr.bf16.mxu0 0
    %552 = vmatpush1.bf16.msra.mxu0 0
    %553 = vmatprep.subr.bf16.mxu0 0
    %554 = vmatpush1.bf16.msra.mxu0 0
    %555 = vmatprep.subr.bf16.mxu0 0
    %556 = vmatpush1.bf16.msra.mxu0 0
    %557 = vmatprep.subr.bf16.mxu0 0
    %558 = vmatpush1.bf16.msra.mxu0 0
    %559 = vmatprep.subr.bf16.mxu0 0
    %560 = vmatpush1.bf16.msra.mxu0 0
    %561 = vmatprep.subr.bf16.mxu0 0
    %562 = vmatpush1.bf16.msra.mxu0 0
    %563 = vmatprep.mubr.bf16.mxu0 0
    %564 = vmatmul.mubr.bf16.gmra.mrb[0].mxu0 %v466
    %v565 = vpop.f32.mrb[0].mxu0
    %v566 = vadd.f32 %v93, %v565
    %v567 = vpop.f32.mrb[0].mxu0
    %v568 = vpop.f32.mrb[0].mxu0
    %v569 = vadd.f32 %v93, %v568
    %v570 = vpop.f32.mrb[0].mxu0
    %571 = vdwg.mxu0
    %572 = vst [vmem:[#allocation11] sm:$0xff] %v566
    %573 = vst [vmem:[#allocation11 + $0x8] sm:$0xff] %v569
    // Predicated region
    $region42: #{tpu_custom_call.1} parent=1 // pred_check
      _
    $region43: #{tpu_custom_call.1} parent=1 // pred_check_branch
      %575 = sbr.rel (0) target = $region45
    $region44: #{tpu_custom_call.1} parent=1 // pred_region
      %s577 = ssub.s32 256, 256
      %578 = vsyncadd [#allocation4], %s577
      %s579 = sshll.u32 [#allocation11], 4
      %s580 = int_to_ptr.vmem [resolvable:$true] %s579
      %585 = dma.vmem_to_hbm [thread:$0]  %s580, 256, %s5, [#allocation4], 128, 128, 8
    $region45: #{tpu_custom_call.1} parent=1 // pred_fallthru
      _
    // Predicated region
    $region46: #{tpu_custom_call.1} parent=1 // pred_check
      _
    $region47: #{tpu_custom_call.1} parent=1 // pred_check_branch
      %587 = sbr.rel (0) target = $region49
    $region48: #{tpu_custom_call.1} parent=1 // pred_region
      %588 = dma.done [#allocation4], 256
    $region49: #{tpu_custom_call.1} parent=1 // pred_fallthru
      _
    %589 = vsyncpa [#allocation3], 1
    %590 = vsyncpa [#allocation6], 1
    %591 = vsyncpa [#allocation9], 1
    %592 = vsyncpa [#allocation4], 1

</llo_original>
